<compile_context>
chip_gen: v5e
topology: v5e:2x2
jax: 0.10.0
libtpu: 0.0.40
codegen_flags: <defaults>
</compile_context>

<pallas_src>
import jax
import jax.numpy as jnp
from jax.experimental import pallas as pl
from jax.experimental.pallas import tpu as pltpu

INNER_DIM = 64
SUBLANE = 8
MAX_TILE_B = 8192   # per-step x+out ~1.5 MiB (double-buffered ~3 MiB) -> far below
                    # every gen's VMEM, far above per-step pipeline overhead.


def mlp_kernel(x_ref, w1_ref, b1_ref, w2_ref, b2_ref, w3_ref, b3_ref,
               w4_ref, b4_ref, o_ref):
    # x tile: (TILE_B, in_dim) f32.  Weights: bf16, resident across grid steps.
    x = x_ref[...]

    # Layer 1: Linear + Sigmoid (bf16 MXU operands, f32 accumulate, f32 VPU math).
    h = jnp.dot(x.astype(jnp.bfloat16), w1_ref[...],
                preferred_element_type=jnp.float32) + b1_ref[...]
    # sigmoid(h) = 0.5*(tanh(0.5*h)+1): single EUP transcendental, overflow-free.
    h = 0.5 * (jnp.tanh(0.5 * h) + 1.0)

    # Layer 2: Linear + ReLU.
    h = jnp.dot(h.astype(jnp.bfloat16), w2_ref[...],
                preferred_element_type=jnp.float32) + b2_ref[...]
    h = jnp.maximum(h, 0.0)

    # Layer 3: Linear + ReLU.
    h = jnp.dot(h.astype(jnp.bfloat16), w3_ref[...],
                preferred_element_type=jnp.float32) + b3_ref[...]
    h = jnp.maximum(h, 0.0)

    # Layer 4: Linear (true out_dim store; no padding, no post-kernel slice).
    y = jnp.dot(h.astype(jnp.bfloat16), w4_ref[...],
                preferred_element_type=jnp.float32) + b4_ref[...]
    o_ref[...] = y.astype(o_ref.dtype)


def net_forward(x, params, *, tile_b=MAX_TILE_B,
                batch_axis_semantics=pltpu.PARALLEL):
    """x: (B, input_dim) f32.  params: bf16 weights (in,out) / f32 biases (1,out)."""
    B, d_in = x.shape
    out_dim = params["w4"].shape[1]

    # Batch tile: if the whole batch fits in one tile, use a full-array block
    # (always a legal block shape, no padding needed).  Otherwise use MAX_TILE_B
    # (a multiple of 8) and let Pallas mask the ragged last block.
    tb = B if B <= tile_b else tile_b
    grid = (pl.cdiv(B, tb),)

    # Weights/biases: full-array blocks with constant index_map -> fetched once,
    # kept resident in VMEM for every batch tile.
    resident = lambda a: pl.BlockSpec(a.shape, lambda i: (0,) * a.ndim)
    weights = (params["w1"], params["b1"], params["w2"], params["b2"],
               params["w3"], params["b3"], params["w4"], params["b4"])

    weight_bytes = sum(int(a.size) * a.dtype.itemsize for a in weights)
    cost = pl.CostEstimate(
        flops=2 * B * (d_in * INNER_DIM + 2 * INNER_DIM * INNER_DIM
                       + INNER_DIM * out_dim),
        transcendentals=B * INNER_DIM,                       # tanh in layer 1
        bytes_accessed=B * (d_in + out_dim) * 4 + weight_bytes,
    )

    y = pl.pallas_call(
        mlp_kernel,
        out_shape=jax.ShapeDtypeStruct((B, out_dim), jnp.float32),
        grid=grid,
        in_specs=[pl.BlockSpec((tb, d_in), lambda i: (i, 0))] +
                 [resident(a) for a in weights],
        out_specs=pl.BlockSpec((tb, out_dim), lambda i: (i, 0)),
        compiler_params=pltpu.CompilerParams(
            # Pass pltpu.CORE_PARALLEL here on v7x to shard the batch grid over
            # both TensorCores; PARALLEL is the safe default on v5e/v6e.
            dimension_semantics=(batch_axis_semantics,),
            vmem_limit_bytes=48 * 1024 * 1024),
        cost_estimate=cost,
    )(x, *weights)

    return y


def init_params(key, input_dim, output_dim):
    """nn.Linear-style init; weights stored transposed (in, out) at natural
    (unpadded) shapes, cast to bf16 for the MXU.  Unpadded f32 copies are kept
    for the reference path."""
    dims = [(input_dim, INNER_DIM), (INNER_DIM, INNER_DIM),
            (INNER_DIM, INNER_DIM), (INNER_DIM, output_dim)]
    params = {"in_dim": input_dim, "out_dim": output_dim}
    for i, (din, dout) in enumerate(dims, start=1):
        key, kw, kb = jax.random.split(key, 3)
        bound = 1.0 / (din ** 0.5)   # PyTorch default uniform(-1/sqrt(fan_in), +)
        w = jax.random.uniform(kw, (din, dout), jnp.float32, -bound, bound)
        b = jax.random.uniform(kb, (1, dout), jnp.float32, -bound, bound)
        params[f"w{i}"] = w.astype(jnp.bfloat16)   # MXU operand
        params[f"b{i}"] = b                        # bias add stays f32
        params[f"w{i}_f32"] = w
        params[f"b{i}_f32"] = b
    return params


def reference_forward_f32(x, params):
    """Exact f32 equivalent of the PyTorch module."""
    h = jax.nn.sigmoid(x @ params["w1_f32"] + params["b1_f32"])
    h = jax.nn.relu(h @ params["w2_f32"] + params["b2_f32"])
    h = jax.nn.relu(h @ params["w3_f32"] + params["b3_f32"])
    return h @ params["w4_f32"] + params["b4_f32"]


def reference_forward_bf16(x, params):
    """Mirrors the kernel's math (bf16 matmul operands, f32 accumulation)."""
    h = jax.nn.sigmoid(jnp.dot(x.astype(jnp.bfloat16), params["w1"],
                               preferred_element_type=jnp.float32) + params["b1"])
    h = jax.nn.relu(jnp.dot(h.astype(jnp.bfloat16), params["w2"],
                            preferred_element_type=jnp.float32) + params["b2"])
    h = jax.nn.relu(jnp.dot(h.astype(jnp.bfloat16), params["w3"],
                            preferred_element_type=jnp.float32) + params["b3"])
    return jnp.dot(h.astype(jnp.bfloat16), params["w4"],
                   preferred_element_type=jnp.float32) + params["b4"]


if __name__ == "__main__":
    batch, input_dim, output_dim = 8, 32, 16

    key = jax.random.PRNGKey(0)
    key, kx = jax.random.split(key)
    x = jax.random.normal(kx, (batch, input_dim), jnp.float32)
    params = init_params(key, input_dim, output_dim)

    y = net_forward(x, params)
    jax.block_until_ready(y)
    assert y.shape == (batch, output_dim)

    # Matches the kernel's own (bf16-operand) math closely...
    y_bf16 = reference_forward_bf16(x, params)
    assert jnp.allclose(y, y_bf16, atol=1e-2, rtol=1e-2), \
        float(jnp.max(jnp.abs(y - y_bf16)))
    # ...and the exact f32 forward to bf16 accuracy.
    y_f32 = reference_forward_f32(x, params)
    assert jnp.allclose(y, y_f32, atol=1e-1, rtol=1e-1), \
        float(jnp.max(jnp.abs(y - y_f32)))

    print("KERNEL_OK")
</pallas_src>

<mosaic_0001>
module attributes {stable_mosaic.version = 11 : i64} {
  func.func @mlp_kernel(%arg0: i32, %arg1: memref<8x32xf32, #tpu.memory_space<vmem>>, %arg2: memref<32x64xbf16, #tpu.memory_space<vmem>>, %arg3: memref<1x64xf32, #tpu.memory_space<vmem>>, %arg4: memref<64x64xbf16, #tpu.memory_space<vmem>>, %arg5: memref<1x64xf32, #tpu.memory_space<vmem>>, %arg6: memref<64x64xbf16, #tpu.memory_space<vmem>>, %arg7: memref<1x64xf32, #tpu.memory_space<vmem>>, %arg8: memref<64x16xbf16, #tpu.memory_space<vmem>>, %arg9: memref<1x16xf32, #tpu.memory_space<vmem>>, %arg10: memref<8x16xf32, #tpu.memory_space<vmem>>) attributes {dimension_semantics = [#tpu.dimension_semantics<parallel>], iteration_bounds = array<i64: 1>, scalar_prefetch = 0 : i64, scratch_operands = 0 : i64, tpu.core_type = #tpu.core_type<tc>, window_params = [{transform_indices = @transform_0, window_bounds = array<i64: 8, 32>}, {pipeline_mode = #tpu.pipeline_mode<synchronous>, transform_indices = @transform_1, window_bounds = array<i64: 32, 64>}, {pipeline_mode = #tpu.pipeline_mode<synchronous>, transform_indices = @transform_2, window_bounds = array<i64: 1, 64>}, {pipeline_mode = #tpu.pipeline_mode<synchronous>, transform_indices = @transform_3, window_bounds = array<i64: 64, 64>}, {pipeline_mode = #tpu.pipeline_mode<synchronous>, transform_indices = @transform_4, window_bounds = array<i64: 1, 64>}, {pipeline_mode = #tpu.pipeline_mode<synchronous>, transform_indices = @transform_5, window_bounds = array<i64: 64, 64>}, {pipeline_mode = #tpu.pipeline_mode<synchronous>, transform_indices = @transform_6, window_bounds = array<i64: 1, 64>}, {pipeline_mode = #tpu.pipeline_mode<synchronous>, transform_indices = @transform_7, window_bounds = array<i64: 64, 16>}, {pipeline_mode = #tpu.pipeline_mode<synchronous>, transform_indices = @transform_8, window_bounds = array<i64: 1, 16>}, {transform_indices = @transform_9, window_bounds = array<i64: 8, 16>}]} {
    %c0 = arith.constant 0 : index
    %c0_0 = arith.constant 0 : index
    %0 = vector.load %arg1[%c0, %c0_0] : memref<8x32xf32, #tpu.memory_space<vmem>>, vector<8x32xf32>
    %1 = arith.truncf %0 : vector<8x32xf32> to vector<8x32xbf16>
    %c0_1 = arith.constant 0 : index
    %c0_2 = arith.constant 0 : index
    %2 = vector.load %arg2[%c0_1, %c0_2] : memref<32x64xbf16, #tpu.memory_space<vmem>>, vector<32x64xbf16>
    %cst = arith.constant dense<0.000000e+00> : vector<8x64xf32>
    %3 = tpu.matmul %1, %2, %cst {dimension_numbers = #tpu.dot_dimension_numbers<[1], [0], [0], [1], [0, 0, 1, 1], [], []>} : vector<8x32xbf16>, vector<32x64xbf16>, vector<8x64xf32> -> vector<8x64xf32>
    %c0_3 = arith.constant 0 : index
    %c0_4 = arith.constant 0 : index
    %4 = vector.load %arg3[%c0_3, %c0_4] : memref<1x64xf32, #tpu.memory_space<vmem>>, vector<1x64xf32>
    %5 = vector.broadcast %4 : vector<1x64xf32> to vector<8x64xf32>
    %6 = arith.addf %3, %5 : vector<8x64xf32>
    %cst_5 = arith.constant 5.000000e-01 : f32
    %7 = vector.broadcast %cst_5 : f32 to vector<8x64xf32>
    %8 = arith.mulf %7, %6 : vector<8x64xf32>
    %9 = math.tanh %8 : vector<8x64xf32>
    %cst_6 = arith.constant 1.000000e+00 : f32
    %10 = vector.broadcast %cst_6 : f32 to vector<8x64xf32>
    %11 = arith.addf %9, %10 : vector<8x64xf32>
    %cst_7 = arith.constant 5.000000e-01 : f32
    %12 = vector.broadcast %cst_7 : f32 to vector<8x64xf32>
    %13 = arith.mulf %12, %11 : vector<8x64xf32>
    %14 = arith.truncf %13 : vector<8x64xf32> to vector<8x64xbf16>
    %c0_8 = arith.constant 0 : index
    %c0_9 = arith.constant 0 : index
    %15 = vector.load %arg4[%c0_8, %c0_9] : memref<64x64xbf16, #tpu.memory_space<vmem>>, vector<64x64xbf16>
    %cst_10 = arith.constant dense<0.000000e+00> : vector<8x64xf32>
    %16 = tpu.matmul %14, %15, %cst_10 {dimension_numbers = #tpu.dot_dimension_numbers<[1], [0], [0], [1], [0, 0, 1, 1], [], []>} : vector<8x64xbf16>, vector<64x64xbf16>, vector<8x64xf32> -> vector<8x64xf32>
    %c0_11 = arith.constant 0 : index
    %c0_12 = arith.constant 0 : index
    %17 = vector.load %arg5[%c0_11, %c0_12] : memref<1x64xf32, #tpu.memory_space<vmem>>, vector<1x64xf32>
    %18 = vector.broadcast %17 : vector<1x64xf32> to vector<8x64xf32>
    %19 = arith.addf %16, %18 : vector<8x64xf32>
    %cst_13 = arith.constant 0.000000e+00 : f32
    %20 = vector.broadcast %cst_13 : f32 to vector<8x64xf32>
    %21 = arith.maximumf %19, %20 : vector<8x64xf32>
    %22 = arith.truncf %21 : vector<8x64xf32> to vector<8x64xbf16>
    %c0_14 = arith.constant 0 : index
    %c0_15 = arith.constant 0 : index
    %23 = vector.load %arg6[%c0_14, %c0_15] : memref<64x64xbf16, #tpu.memory_space<vmem>>, vector<64x64xbf16>
    %cst_16 = arith.constant dense<0.000000e+00> : vector<8x64xf32>
    %24 = tpu.matmul %22, %23, %cst_16 {dimension_numbers = #tpu.dot_dimension_numbers<[1], [0], [0], [1], [0, 0, 1, 1], [], []>} : vector<8x64xbf16>, vector<64x64xbf16>, vector<8x64xf32> -> vector<8x64xf32>
    %c0_17 = arith.constant 0 : index
    %c0_18 = arith.constant 0 : index
    %25 = vector.load %arg7[%c0_17, %c0_18] : memref<1x64xf32, #tpu.memory_space<vmem>>, vector<1x64xf32>
    %26 = vector.broadcast %25 : vector<1x64xf32> to vector<8x64xf32>
    %27 = arith.addf %24, %26 : vector<8x64xf32>
    %cst_19 = arith.constant 0.000000e+00 : f32
    %28 = vector.broadcast %cst_19 : f32 to vector<8x64xf32>
    %29 = arith.maximumf %27, %28 : vector<8x64xf32>
    %30 = arith.truncf %29 : vector<8x64xf32> to vector<8x64xbf16>
    %c0_20 = arith.constant 0 : index
    %c0_21 = arith.constant 0 : index
    %31 = vector.load %arg8[%c0_20, %c0_21] : memref<64x16xbf16, #tpu.memory_space<vmem>>, vector<64x16xbf16>
    %cst_22 = arith.constant dense<0.000000e+00> : vector<8x16xf32>
    %32 = tpu.matmul %30, %31, %cst_22 {dimension_numbers = #tpu.dot_dimension_numbers<[1], [0], [0], [1], [0, 0, 1, 1], [], []>} : vector<8x64xbf16>, vector<64x16xbf16>, vector<8x16xf32> -> vector<8x16xf32>
    %c0_23 = arith.constant 0 : index
    %c0_24 = arith.constant 0 : index
    %33 = vector.load %arg9[%c0_23, %c0_24] : memref<1x16xf32, #tpu.memory_space<vmem>>, vector<1x16xf32>
    %34 = vector.broadcast %33 : vector<1x16xf32> to vector<8x16xf32>
    %35 = arith.addf %32, %34 : vector<8x16xf32>
    %c0_25 = arith.constant 0 : index
    %c0_26 = arith.constant 0 : index
    %36 = vector.load %arg10[%c0_25, %c0_26] : memref<8x16xf32, #tpu.memory_space<vmem>>, vector<8x16xf32>
    tpu.vector_store %arg10[%c0_25, %c0_26], %35 {strides = array<i32>} : memref<8x16xf32, #tpu.memory_space<vmem>>, vector<8x16xf32>,
    return
  }
  func.func @transform_0(%arg0: i32) -> (i32, i32) {
    %c0_i32 = arith.constant 0 : i32
    %c0_i32_0 = arith.constant 0 : i32
    return %arg0, %c0_i32 : i32, i32
  }
  func.func @transform_1(%arg0: i32) -> (i32, i32) {
    %c0_i32 = arith.constant 0 : i32
    %c0_i32_0 = arith.constant 0 : i32
    %c0_i32_1 = arith.constant 0 : i32
    return %c0_i32, %c0_i32_0 : i32, i32
  }
  func.func @transform_2(%arg0: i32) -> (i32, i32) {
    %c0_i32 = arith.constant 0 : i32
    %c0_i32_0 = arith.constant 0 : i32
    %c0_i32_1 = arith.constant 0 : i32
    return %c0_i32, %c0_i32_0 : i32, i32
  }
  func.func @transform_3(%arg0: i32) -> (i32, i32) {
    %c0_i32 = arith.constant 0 : i32
    %c0_i32_0 = arith.constant 0 : i32
    %c0_i32_1 = arith.constant 0 : i32
    return %c0_i32, %c0_i32_0 : i32, i32
  }
  func.func @transform_4(%arg0: i32) -> (i32, i32) {
    %c0_i32 = arith.constant 0 : i32
    %c0_i32_0 = arith.constant 0 : i32
    %c0_i32_1 = arith.constant 0 : i32
    return %c0_i32, %c0_i32_0 : i32, i32
  }
  func.func @transform_5(%arg0: i32) -> (i32, i32) {
    %c0_i32 = arith.constant 0 : i32
    %c0_i32_0 = arith.constant 0 : i32
    %c0_i32_1 = arith.constant 0 : i32
    return %c0_i32, %c0_i32_0 : i32, i32
  }
  func.func @transform_6(%arg0: i32) -> (i32, i32) {
    %c0_i32 = arith.constant 0 : i32
    %c0_i32_0 = arith.constant 0 : i32
    %c0_i32_1 = arith.constant 0 : i32
    return %c0_i32, %c0_i32_0 : i32, i32
  }
  func.func @transform_7(%arg0: i32) -> (i32, i32) {
    %c0_i32 = arith.constant 0 : i32
    %c0_i32_0 = arith.constant 0 : i32
    %c0_i32_1 = arith.constant 0 : i32
    return %c0_i32, %c0_i32_0 : i32, i32
  }
  func.func @transform_8(%arg0: i32) -> (i32, i32) {
    %c0_i32 = arith.constant 0 : i32
    %c0_i32_0 = arith.constant 0 : i32
    %c0_i32_1 = arith.constant 0 : i32
    return %c0_i32, %c0_i32_0 : i32, i32
  }
  func.func @transform_9(%arg0: i32) -> (i32, i32) {
    %c0_i32 = arith.constant 0 : i32
    %c0_i32_0 = arith.constant 0 : i32
    return %arg0, %c0_i32 : i32, i32
  }
}

</mosaic_0001>

<llo_original>
// kernel: tpu_custom_call.1
$region0: #{tpu_custom_call.1}
  #allocation0 [shape = 'u32[]', space=smem, size = 0x4, offset = 0x4, fixed_abs, tag = 'smem constant byte address 0x4 - core index']
  #allocation1 [shape = 'u32[72,128]{1,0:T(1,128)}', space=vmem, size = 0x9000, scoped, tag = 'internal scratch']
  %s0 = inlined_call_operand.vmem [shape: f32[8,32], index: 0, kind: input, shape index: {}]
  %s1 = inlined_call_operand.hbm [shape: bf16[32,64], index: 1, kind: input, shape index: {}]
  %s2 = inlined_call_operand.vmem [shape: f32[1,64], index: 2, kind: input, shape index: {}]
  %s3 = inlined_call_operand.vmem [shape: bf16[64,64], index: 3, kind: input, shape index: {}]
  %s4 = inlined_call_operand.vmem [shape: f32[1,64], index: 4, kind: input, shape index: {}]
  %s5 = inlined_call_operand.hbm [shape: bf16[64,64], index: 5, kind: input, shape index: {}]
  %s6 = inlined_call_operand.vmem [shape: f32[1,64], index: 6, kind: input, shape index: {}]
  %s7 = inlined_call_operand.vmem [shape: bf16[64,16], index: 7, kind: input, shape index: {}]
  %s8 = inlined_call_operand.vmem [shape: f32[1,16], index: 8, kind: input, shape index: {}]
  %s9 = inlined_call_operand.hbm [shape: f32[8,16], index: 9, kind: output, shape index: {}]
  %s10 = sld [smem:[#allocation0]]
  $region54: #{tpu_custom_call.1} parent=0
    _
  %s12 = ssub.s32 1, %s10
  %s13 = scalar_select 0, %s12, %s10
  $region1: #{tpu_custom_call.1} parent=0
    #allocation2 [shape = 'u8[8192]{0}', space=vmem, size = 0x2000, scoped, tag = 'input window, operand 1, single buffered']
    #allocation3 [shape = 's32[1]{0}', space=sflag, size = 0x4, scoped, tag = 'scoped memory for tpu_custom_call.1']
    #allocation4 [shape = 's32[1]{0}', space=sflag, size = 0x4, scoped, tag = 'scoped memory for tpu_custom_call.1']
    #allocation5 [shape = 'u8[16384]{0}', space=vmem, size = 0x4000, scoped, tag = 'input window, operand 5, single buffered']
    #allocation6 [shape = 's32[1]{0}', space=sflag, size = 0x4, scoped, tag = 'scoped memory for tpu_custom_call.1']
    #allocation7 [shape = 'u8[4096]{0}', space=vmem, size = 0x1000, scoped, tag = 'output window, operand 0, single buffered']
    %14 = vsyncpa [#allocation3], 0
    %15 = vsyncpa [#allocation6], 0
    %16 = vsyncpa [#allocation4], 0
    // Predicated region
    $region2: #{tpu_custom_call.1} parent=1 // pred_check
      _
    $region3: #{tpu_custom_call.1} parent=1 // pred_check_branch
      %18 = sbr.rel (0) target = $region5
    $region4: #{tpu_custom_call.1} parent=1 // pred_region
      _
    $region5: #{tpu_custom_call.1} parent=1 // pred_fallthru
      _
    // Predicated region
    $region6: #{tpu_custom_call.1} parent=1 // pred_check
      _
    $region7: #{tpu_custom_call.1} parent=1 // pred_check_branch
      %20 = sbr.rel (0) target = $region9
    $region8: #{tpu_custom_call.1} parent=1 // pred_region
      %22 = vsyncadd [#allocation3], 0
      %s23 = sshll.u32 %s1, 4
      %s24 = int_to_ptr.hbm [resolvable:$true] %s23
      %s25 = sshll.u32 [#allocation2], 4
      %s26 = int_to_ptr.vmem [resolvable:$true] %s25
      %31 = dma.hbm_to_vmem [thread:$0]  %s24, 256, %s26, [#allocation3], 64, 64, 4
    $region9: #{tpu_custom_call.1} parent=1 // pred_fallthru
      _
    // Predicated region
    $region10: #{tpu_custom_call.1} parent=1 // pred_check
      _
    $region11: #{tpu_custom_call.1} parent=1 // pred_check_branch
      %33 = sbr.rel (0) target = $region13
    $region12: #{tpu_custom_call.1} parent=1 // pred_region
      _
    $region13: #{tpu_custom_call.1} parent=1 // pred_fallthru
      _
    // Predicated region
    $region14: #{tpu_custom_call.1} parent=1 // pred_check
      _
    $region15: #{tpu_custom_call.1} parent=1 // pred_check_branch
      %35 = sbr.rel (0) target = $region17
    $region16: #{tpu_custom_call.1} parent=1 // pred_region
      _
    $region17: #{tpu_custom_call.1} parent=1 // pred_fallthru
      _
    // Predicated region
    $region18: #{tpu_custom_call.1} parent=1 // pred_check
      _
    $region19: #{tpu_custom_call.1} parent=1 // pred_check_branch
      %37 = sbr.rel (0) target = $region21
    $region20: #{tpu_custom_call.1} parent=1 // pred_region
      _
    $region21: #{tpu_custom_call.1} parent=1 // pred_fallthru
      _
    // Predicated region
    $region22: #{tpu_custom_call.1} parent=1 // pred_check
      _
    $region23: #{tpu_custom_call.1} parent=1 // pred_check_branch
      %39 = sbr.rel (0) target = $region25
    $region24: #{tpu_custom_call.1} parent=1 // pred_region
      %41 = vsyncadd [#allocation6], 0
      %s42 = sshll.u32 %s5, 4
      %s43 = int_to_ptr.hbm [resolvable:$true] %s42
      %s44 = sshll.u32 [#allocation5], 4
      %s45 = int_to_ptr.vmem [resolvable:$true] %s44
      %50 = dma.hbm_to_vmem [thread:$0]  %s43, 512, %s45, [#allocation6], 64, 64, 4
    $region25: #{tpu_custom_call.1} parent=1 // pred_fallthru
      _
    // Predicated region
    $region26: #{tpu_custom_call.1} parent=1 // pred_check
      _
    $region27: #{tpu_custom_call.1} parent=1 // pred_check_branch
      %52 = sbr.rel (0) target = $region29
    $region28: #{tpu_custom_call.1} parent=1 // pred_region
      _
    $region29: #{tpu_custom_call.1} parent=1 // pred_fallthru
      _
    // Predicated region
    $region30: #{tpu_custom_call.1} parent=1 // pred_check
      _
    $region31: #{tpu_custom_call.1} parent=1 // pred_check_branch
      %54 = sbr.rel (0) target = $region33
    $region32: #{tpu_custom_call.1} parent=1 // pred_region
      _
    $region33: #{tpu_custom_call.1} parent=1 // pred_fallthru
      _
    // Predicated region
    $region34: #{tpu_custom_call.1} parent=1 // pred_check
      _
    $region35: #{tpu_custom_call.1} parent=1 // pred_check_branch
      %56 = sbr.rel (0) target = $region37
    $region36: #{tpu_custom_call.1} parent=1 // pred_region
      _
    $region37: #{tpu_custom_call.1} parent=1 // pred_fallthru
      _
    // Predicated region
    $region38: #{tpu_custom_call.1} parent=1 // pred_check
      _
    $region39: #{tpu_custom_call.1} parent=1 // pred_check_branch
      %58 = sbr.rel (0) target = $region41
    $region40: #{tpu_custom_call.1} parent=1 // pred_region
      %60 = dma.done [#allocation3], 256
    $region41: #{tpu_custom_call.1} parent=1 // pred_fallthru
      _
    // Predicated region
    $region42: #{tpu_custom_call.1} parent=1 // pred_check
      _
    $region43: #{tpu_custom_call.1} parent=1 // pred_check_branch
      %62 = sbr.rel (0) target = $region45
    $region44: #{tpu_custom_call.1} parent=1 // pred_region
      %64 = dma.done [#allocation6], 512
    $region45: #{tpu_custom_call.1} parent=1 // pred_fallthru
      _
    %v66 = vld [vmem:[%s0] sm:$0xff]
    %v67 = vpack.c.bf16 %v66, %v66
    %v68 = vld [vmem:[#allocation2] sm:$0xf]
    %v69 = vld [vmem:[#allocation2 + $0x4] sm:$0xf]
    %v70 = vld [vmem:[#allocation2 + $0x8] sm:$0xf]
    %v71 = vld [vmem:[#allocation2 + $0xc] sm:$0xf]
    %v72 = vld [vmem:[%s2] sm:$0x1]
    %v74 = vperm.slane %v72, 0
    %v80 = vunpack.c.l.b16 %v68
    %v81 = vunpack.c.l.b16 %v69
    %v82 = vunpack.c.l.b16 %v70
    %v83 = vunpack.c.l.b16 %v71
    %v84 = vpack.c.b16 %v81, %v80
    %v85 = vpack.c.b16 %v83, %v82
    %vm88 = vcmask 261120
    %v90 = vsel %vm88, %v67, 0
    %92 = vmatpush.bf16.msra.mxu0 0
    %93 = vmatpush.bf16.msra.mxu0 0
    %94 = vmatpush.bf16.msra.mxu0 0
    %95 = vmatpush.bf16.msra.mxu0 0
    %96 = vmatpush.bf16.msra.mxu0 0
    %97 = vmatpush.bf16.msra.mxu0 0
    %98 = vmatpush.bf16.msra.mxu0 %v85
    %99 = vmatpush.bf16.msra.mxu0 %v84
    %100 = vmatmul.bf16.gmra.mxu0 %v90
    %v101 = vpop.f32.mrf.mxu0
    %v102 = vadd.f32 %v74, %v101
    %v103 = vpop.f32.mrf.mxu0
    %104 = vdwg.mxu0
    %v105 = vmul.f32 %v102, 0.5
    %v106 = vtanh.pop %v105
    %v107 = vadd.f32 %v106, 1.0
    %v108 = vmul.f32 %v107, 0.5
    %v109 = vpack.c.bf16 %v108, %v108
    %v110 = vld [vmem:[%s3] sm:$0xf]
    %v111 = vld [vmem:[%s3 + $0x4] sm:$0xf]
    %v112 = vld [vmem:[%s3 + $0x8] sm:$0xf]
    %v113 = vld [vmem:[%s3 + $0xc] sm:$0xf]
    %v114 = vld [vmem:[%s3 + $0x10] sm:$0xf]
    %v115 = vld [vmem:[%s3 + $0x14] sm:$0xf]
    %v116 = vld [vmem:[%s3 + $0x18] sm:$0xf]
    %v117 = vld [vmem:[%s3 + $0x1c] sm:$0xf]
    %v118 = vld [vmem:[%s4] sm:$0x1]
    %v120 = vperm.slane %v118, 0
    %v130 = vunpack.c.l.b16 %v110
    %v131 = vunpack.c.l.b16 %v111
    %v132 = vunpack.c.l.b16 %v112
    %v133 = vunpack.c.l.b16 %v113
    %v134 = vunpack.c.l.b16 %v114
    %v135 = vunpack.c.l.b16 %v115
    %v136 = vunpack.c.l.b16 %v116
    %v137 = vunpack.c.l.b16 %v117
    %v138 = vpack.c.b16 %v131, %v130
    %v139 = vpack.c.b16 %v133, %v132
    %v140 = vpack.c.b16 %v135, %v134
    %v141 = vpack.c.b16 %v137, %v136
    %vm146 = vcmask 523264
    %v148 = vsel %vm146, %v109, 0
    %150 = vmatpush.bf16.msra.mxu0 0
    %151 = vmatpush.bf16.msra.mxu0 0
    %152 = vmatpush.bf16.msra.mxu0 0
    %153 = vmatpush.bf16.msra.mxu0 0
    %154 = vmatpush.bf16.msra.mxu0 %v141
    %155 = vmatpush.bf16.msra.mxu0 %v140
    %156 = vmatpush.bf16.msra.mxu0 %v139
    %157 = vmatpush.bf16.msra.mxu0 %v138
    %158 = vmatmul.bf16.gmra.mxu0 %v148
    %v159 = vpop.f32.mrf.mxu0
    %v160 = vadd.f32 %v120, %v159
    %v161 = vpop.f32.mrf.mxu0
    %162 = vdwg.mxu0
    %v163 = vmax.f32 %v160, 0.0
    %v164 = vpack.c.bf16 %v163, %v163
    %v165 = vld [vmem:[#allocation5] sm:$0xf]
    %v166 = vld [vmem:[#allocation5 + $0x4] sm:$0xf]
    %v167 = vld [vmem:[#allocation5 + $0x8] sm:$0xf]
    %v168 = vld [vmem:[#allocation5 + $0xc] sm:$0xf]
    %v169 = vld [vmem:[#allocation5 + $0x10] sm:$0xf]
    %v170 = vld [vmem:[#allocation5 + $0x14] sm:$0xf]
    %v171 = vld [vmem:[#allocation5 + $0x18] sm:$0xf]
    %v172 = vld [vmem:[#allocation5 + $0x1c] sm:$0xf]
    %v173 = vld [vmem:[%s6] sm:$0x1]
    %v175 = vperm.slane %v173, 0
    %v185 = vunpack.c.l.b16 %v165
    %v186 = vunpack.c.l.b16 %v166
    %v187 = vunpack.c.l.b16 %v167
    %v188 = vunpack.c.l.b16 %v168
    %v189 = vunpack.c.l.b16 %v169
    %v190 = vunpack.c.l.b16 %v170
    %v191 = vunpack.c.l.b16 %v171
    %v192 = vunpack.c.l.b16 %v172
    %v193 = vpack.c.b16 %v186, %v185
    %v194 = vpack.c.b16 %v188, %v187
    %v195 = vpack.c.b16 %v190, %v189
    %v196 = vpack.c.b16 %v192, %v191
    %v202 = vsel %vm146, %v164, 0
    %204 = vmatpush.bf16.msra.mxu0 0
    %205 = vmatpush.bf16.msra.mxu0 0
    %206 = vmatpush.bf16.msra.mxu0 0
    %207 = vmatpush.bf16.msra.mxu0 0
    %208 = vmatpush.bf16.msra.mxu0 %v196
    %209 = vmatpush.bf16.msra.mxu0 %v195
    %210 = vmatpush.bf16.msra.mxu0 %v194
    %211 = vmatpush.bf16.msra.mxu0 %v193
    %212 = vmatmul.bf16.gmra.mxu0 %v202
    %v213 = vpop.f32.mrf.mxu0
    %v214 = vadd.f32 %v175, %v213
    %v215 = vpop.f32.mrf.mxu0
    %216 = vdwg.mxu0
    %v217 = vmax.f32 %v214, 0.0
    %v218 = vpack.c.bf16 %v217, %v217
    %v219 = vld [vmem:[%s7] sm:$0xf]
    %v220 = vld [vmem:[%s7 + $0x4] sm:$0xf]
    %v221 = vld [vmem:[%s7 + $0x8] sm:$0xf]
    %v222 = vld [vmem:[%s7 + $0xc] sm:$0xf]
    %v223 = vld [vmem:[%s7 + $0x10] sm:$0xf]
    %v224 = vld [vmem:[%s7 + $0x14] sm:$0xf]
    %v225 = vld [vmem:[%s7 + $0x18] sm:$0xf]
    %v226 = vld [vmem:[%s7 + $0x1c] sm:$0xf]
    %v227 = vld [vmem:[%s8] sm:$0x1]
    %v229 = vperm.slane %v227, 0
    %v239 = vunpack.c.l.b16 %v219
    %v240 = vunpack.c.l.b16 %v220
    %v241 = vunpack.c.l.b16 %v221
    %v242 = vunpack.c.l.b16 %v222
    %v243 = vunpack.c.l.b16 %v223
    %v244 = vunpack.c.l.b16 %v224
    %v245 = vunpack.c.l.b16 %v225
    %v246 = vunpack.c.l.b16 %v226
    %v247 = vpack.c.b16 %v240, %v239
    %v248 = vpack.c.b16 %v242, %v241
    %v249 = vpack.c.b16 %v244, %v243
    %v250 = vpack.c.b16 %v246, %v245
    %v256 = vsel %vm146, %v218, 0
    %258 = vmatpush.bf16.msra.mxu0 0
    %259 = vmatpush.bf16.msra.mxu0 0
    %260 = vmatpush.bf16.msra.mxu0 0
    %261 = vmatpush.bf16.msra.mxu0 0
    %262 = vmatpush.bf16.msra.mxu0 %v250
    %263 = vmatpush.bf16.msra.mxu0 %v249
    %264 = vmatpush.bf16.msra.mxu0 %v248
    %265 = vmatpush.bf16.msra.mxu0 %v247
    %266 = vmatmul.bf16.gmra.mxu0 %v256
    %v267 = vpop.f32.mrf.mxu0
    %v268 = vadd.f32 %v229, %v267
    %v269 = vpop.f32.mrf.mxu0
    %270 = vdwg.mxu0
    %vm271 = vcmask 130048
    %272 = vst.msk [vmem:[#allocation7] sm:$0xff] %vm271, %v268
    // Predicated region
    $region46: #{tpu_custom_call.1} parent=1 // pred_check
      _
    $region47: #{tpu_custom_call.1} parent=1 // pred_check_branch
      %274 = sbr.rel (0) target = $region49
    $region48: #{tpu_custom_call.1} parent=1 // pred_region
      %276 = vsyncadd [#allocation4], 0
      %s278 = sshll.u32 [#allocation7], 4
      %s279 = int_to_ptr.vmem [resolvable:$true] %s278
      %s280 = sshll.u32 %s9, 4
      %s281 = int_to_ptr.hbm [resolvable:$true] %s280
      %283 = dma.vmem_to_hbm [thread:$0]  %s279, 128, %s281, [#allocation4]
    $region49: #{tpu_custom_call.1} parent=1 // pred_fallthru
      _
    // Predicated region
    $region50: #{tpu_custom_call.1} parent=1 // pred_check
      _
    $region51: #{tpu_custom_call.1} parent=1 // pred_check_branch
      %285 = sbr.rel (0) target = $region53
    $region52: #{tpu_custom_call.1} parent=1 // pred_region
      %287 = dma.done [#allocation4], 128
    $region53: #{tpu_custom_call.1} parent=1 // pred_fallthru
      _
    %288 = vsyncpa [#allocation3], 1
    %289 = vsyncpa [#allocation6], 1
    %290 = vsyncpa [#allocation4], 1

</llo_original>
